<compile_context>
chip_gen: v7x
topology: tpu7x:2x2x1
jax: 0.10.0
libtpu: 0.0.40
codegen_flags: <defaults>
</compile_context>

<pallas_src>
import functools

import jax
import jax.numpy as jnp
from jax import lax
from jax.experimental import pallas as pl
from jax.experimental.pallas import tpu as pltpu


NEG_SLOPE = 0.01  # PyTorch nn.LeakyReLU default


def _round_up(n, m):
    return ((n + m - 1) // m) * m


def _cdiv(a, b):
    return -(-a // b)


def _leaky_relu(x):
    # max(x, 0.01*x) == LeakyReLU for 0 < slope < 1 (no compare+select pair).
    return jnp.maximum(x, NEG_SLOPE * x)


def mlp_kernel(x_ref, w1_ref, b1_ref, w2_ref, b2_ref, w3_ref, b3_ref, w4_ref,
               o_ref):
    """Fused 4-layer MLP: (Linear + LeakyReLU) x3 -> Linear(no bias) -> Sigmoid.

    Weights are in PyTorch-native (out_features, in_features) layout, biases
    as (out_features, 1) columns, so intermediates carry batch on lanes.
    """
    x = x_ref[...]  # (tile_b, E) f32 or bf16 -- straight to the MXU.

    # Layer 1: h1^T (h1, tile_b) = W1 (h1, E) . x^T via an NT dot_general.
    h = lax.dot_general(w1_ref[...], x, (((1,), (1,)), ((), ())),
                        preferred_element_type=jnp.float32)
    h = _leaky_relu(h + b1_ref[...])
    # Dropout -> identity (eval mode)

    # Layer 2: (h2, tile_b) = W2 (h2, h1) @ h1^T
    h = jnp.dot(w2_ref[...], h, preferred_element_type=jnp.float32)
    h = _leaky_relu(h + b2_ref[...])

    # Layer 3: (h3, tile_b) = W3 (h3, h2) @ h2^T
    h = jnp.dot(w3_ref[...], h, preferred_element_type=jnp.float32)
    h = _leaky_relu(h + b3_ref[...])

    # Final (h3 -> 1) layer on VPU/XLU: broadcast-multiply by the weight
    # column, reduce over sublanes -> lane-dense (1, tile_b) logits.
    logits = jnp.sum(h * w4_ref[...], axis=0, keepdims=True)

    # Sigmoid: exp on EUP, approximate reciprocal on EUP (divide off the VALU).
    o_ref[...] = pl.reciprocal(1.0 + jnp.exp(-logits),
                               approx=True).astype(o_ref.dtype)


@functools.partial(jax.jit, static_argnames=("max_tile_b",))
def mlp_forward(x, params, max_tile_b=4096):
    """x: (B, E) float32 or bfloat16. params: PyTorch-layout weights/biases.

    Returns a (B, 1) float32 array of sigmoid predictions.
    """
    B, E = x.shape
    w1, b1, w2, b2, w3, b3, w4 = (params["w1"], params["b1"], params["w2"],
                                  params["b2"], params["w3"], params["b3"],
                                  params["w4"])
    h1, h2, h3 = w1.shape[0], w2.shape[0], w3.shape[0]

    # bf16 x goes straight to the MXU (f32 accumulate); only W1 touches x, so
    # cast just that weight to match. Layers 2-4 stay f32 (tiny, VMEM-resident).
    if w1.dtype != x.dtype:
        w1 = w1.astype(x.dtype)

    # Large lane-aligned batch tile so the per-step x DMA dominates the
    # ~0.35 us per-grid-step overhead, without exceeding the batch itself.
    tile_b = min(_round_up(max_tile_b, 128), _round_up(B, 128))
    # v7x megacore: keep >=2 parallel grid steps when the batch is large
    # enough, so both TensorCores get work (harmless on v5e/v6e).
    if B > 1024 and _cdiv(B, tile_b) == 1:
        tile_b = _round_up(_cdiv(B, 2), 128)

    # Output rounded up to a tile multiple -> every output block is full and
    # stores stay lane-dense/unmasked. The INPUT is NOT padded: the last x
    # block is ragged and Pallas clips the DMA; garbage only lands in output
    # lanes >= B, which are sliced off below.
    b_pad = _round_up(B, tile_b)
    grid = (b_pad // tile_b,)

    def full(shape):
        # Whole-array block, constant index map: VMEM-resident across the grid.
        return pl.BlockSpec(shape, lambda i, _nd=len(shape): (0,) * _nd)

    # Explicit VMEM budget: x tile is lane-padded E -> 128 and double-buffered;
    # add headroom for (h, tile_b) intermediates, output and weights.
    lane_e = _round_up(E, 128)
    vmem_est = (2 * tile_b * lane_e * x.dtype.itemsize   # x pipeline buffers
                + 512 * tile_b                           # intermediates + out
                + (2 << 20))                             # weights/biases + slack
    vmem_limit = min(max(32 << 20, int(1.5 * vmem_est)), 64 << 20)

    weight_bytes = sum(int(p.size) * p.dtype.itemsize
                       for p in (w1, b1, w2, b2, w3, b3, w4))
    cost = pl.CostEstimate(
        flops=int(2 * b_pad * (E * h1 + h1 * h2 + h2 * h3 + h3)),
        transcendentals=int(b_pad),
        bytes_accessed=int(B * E * x.dtype.itemsize + weight_bytes + b_pad * 4),
    )

    out_t = pl.pallas_call(
        mlp_kernel,
        out_shape=jax.ShapeDtypeStruct((1, b_pad), jnp.float32),
        grid_spec=pltpu.PrefetchScalarGridSpec(
            num_scalar_prefetch=0,
            grid=grid,
            in_specs=[
                pl.BlockSpec((tile_b, E), lambda i: (i, 0)),  # x tile (ragged tail OK)
                full((h1, E)), full((h1, 1)),
                full((h2, h1)), full((h2, 1)),
                full((h3, h2)), full((h3, 1)),
                full((h3, 1)),
            ],
            out_specs=pl.BlockSpec((1, tile_b), lambda i: (0, i)),
        ),
        compiler_params=pltpu.CompilerParams(
            dimension_semantics=("parallel",),
            vmem_limit_bytes=vmem_limit),
        cost_estimate=cost,
    )(x, w1, b1, w2, b2, w3, b3, w4)

    # (1, B_pad) lane-dense slab -> (B, 1) column expected by callers.
    return out_t[0, :B].reshape(B, 1)


def init_params(key, embedding_size):
    """Deterministic init mirroring the PyTorch module's init_weights:
    xavier_uniform_ for Linear weights, zeros for biases.

    Weights stored PyTorch-native (out_features, in_features); biases as
    (out_features, 1); the final (bias-free) layer's weight as an
    (in_features, 1) column.
    """
    e = embedding_size
    dims = [e, e // 2, e // 4, e // 6, 1]

    def xavier(k, fan_out, fan_in, shape):
        bound = (6.0 / (fan_in + fan_out)) ** 0.5
        return jax.random.uniform(k, shape, jnp.float32,
                                  minval=-bound, maxval=bound)

    k1, k2, k3, k4 = jax.random.split(key, 4)
    return {
        "w1": xavier(k1, dims[1], dims[0], (dims[1], dims[0])),
        "b1": jnp.zeros((dims[1], 1), jnp.float32),
        "w2": xavier(k2, dims[2], dims[1], (dims[2], dims[1])),
        "b2": jnp.zeros((dims[2], 1), jnp.float32),
        "w3": xavier(k3, dims[3], dims[2], (dims[3], dims[2])),
        "b3": jnp.zeros((dims[3], 1), jnp.float32),
        # final Linear has bias=False; stored as (h3, 1) column
        "w4": xavier(k4, dims[4], dims[3], (dims[3], dims[4])),
    }


def mlp_reference(x, params):
    """Pure-JAX reference for verification (f32, highest matmul precision)."""
    hi = jax.lax.Precision.HIGHEST
    h = jnp.where(0 < 1, x, x)  # no-op, keep x as-is
    h = jnp.maximum(jnp.dot(x, params["w1"].T, precision=hi) + params["b1"].T,
                    NEG_SLOPE * (jnp.dot(x, params["w1"].T, precision=hi) + params["b1"].T))
    h = jnp.maximum(jnp.dot(h, params["w2"].T, precision=hi) + params["b2"].T,
                    NEG_SLOPE * (jnp.dot(h, params["w2"].T, precision=hi) + params["b2"].T))
    h = jnp.maximum(jnp.dot(h, params["w3"].T, precision=hi) + params["b3"].T,
                    NEG_SLOPE * (jnp.dot(h, params["w3"].T, precision=hi) + params["b3"].T))
    logits = jnp.dot(h, params["w4"], precision=hi)
    return 1.0 / (1.0 + jnp.exp(-logits))


if __name__ == "__main__":
    embedding_size = 48   # -> hidden dims 24, 12, 8, 1
    key = jax.random.PRNGKey(0)
    k_x, k_p = jax.random.split(key)
    params = init_params(k_p, embedding_size)

    # Small unaligned batch: exercises the ragged final x block (pad-free path).
    x_small = jax.random.normal(k_x, (16, embedding_size), jnp.float32)
    out = jax.block_until_ready(mlp_forward(x_small, params))
    ref = mlp_reference(x_small, params)
    assert out.shape == (16, 1), out.shape
    # approx-reciprocal sigmoid -> slightly looser tolerance than exact f32
    assert jnp.allclose(out, ref, atol=2e-3, rtol=2e-3), "mismatch (small batch)"
    assert bool(jnp.all(jnp.isfinite(out)))

    # Multi-step grid + ragged tail: 300 rows, 128-row tiles -> 3 grid steps.
    x_big = jax.random.normal(k_x, (300, embedding_size), jnp.float32)
    out_b = jax.block_until_ready(mlp_forward(x_big, params, max_tile_b=128))
    ref_b = mlp_reference(x_big, params)
    assert out_b.shape == (300, 1), out_b.shape
    assert jnp.allclose(out_b, ref_b, atol=2e-3, rtol=2e-3), "mismatch (big batch)"
    assert bool(jnp.all(jnp.isfinite(out_b)))

    print("KERNEL_OK")
</pallas_src>

<mosaic_0001>
module attributes {stable_mosaic.version = 11 : i64} {
  func.func @mlp_kernel(%arg0: i32, %arg1: memref<128x48xf32, #tpu.memory_space<vmem>>, %arg2: memref<24x48xf32, #tpu.memory_space<vmem>>, %arg3: memref<24x1xf32, #tpu.memory_space<vmem>>, %arg4: memref<12x24xf32, #tpu.memory_space<vmem>>, %arg5: memref<12x1xf32, #tpu.memory_space<vmem>>, %arg6: memref<8x12xf32, #tpu.memory_space<vmem>>, %arg7: memref<8x1xf32, #tpu.memory_space<vmem>>, %arg8: memref<8x1xf32, #tpu.memory_space<vmem>>, %arg9: memref<1x128xf32, #tpu.memory_space<vmem>>) attributes {dimension_semantics = [#tpu.dimension_semantics<parallel>], iteration_bounds = array<i64: 1>, scalar_prefetch = 0 : i64, scratch_operands = 0 : i64, tpu.core_type = #tpu.core_type<tc>, window_params = [{transform_indices = @transform_0, window_bounds = array<i64: 128, 48>}, {pipeline_mode = #tpu.pipeline_mode<synchronous>, transform_indices = @transform_1, window_bounds = array<i64: 24, 48>}, {pipeline_mode = #tpu.pipeline_mode<synchronous>, transform_indices = @transform_2, window_bounds = array<i64: 24, 1>}, {pipeline_mode = #tpu.pipeline_mode<synchronous>, transform_indices = @transform_3, window_bounds = array<i64: 12, 24>}, {pipeline_mode = #tpu.pipeline_mode<synchronous>, transform_indices = @transform_4, window_bounds = array<i64: 12, 1>}, {pipeline_mode = #tpu.pipeline_mode<synchronous>, transform_indices = @transform_5, window_bounds = array<i64: 8, 12>}, {pipeline_mode = #tpu.pipeline_mode<synchronous>, transform_indices = @transform_6, window_bounds = array<i64: 8, 1>}, {pipeline_mode = #tpu.pipeline_mode<synchronous>, transform_indices = @transform_7, window_bounds = array<i64: 8, 1>}, {transform_indices = @transform_8, window_bounds = array<i64: 1, 128>}]} {
    %c0 = arith.constant 0 : index
    %c0_0 = arith.constant 0 : index
    %0 = vector.load %arg1[%c0, %c0_0] : memref<128x48xf32, #tpu.memory_space<vmem>>, vector<128x48xf32>
    %c0_1 = arith.constant 0 : index
    %c0_2 = arith.constant 0 : index
    %1 = vector.load %arg2[%c0_1, %c0_2] : memref<24x48xf32, #tpu.memory_space<vmem>>, vector<24x48xf32>
    %cst = arith.constant dense<0.000000e+00> : vector<24x128xf32>
    %2 = tpu.matmul %1, %0, %cst {dimension_numbers = #tpu.dot_dimension_numbers<[1], [1], [0], [0], [0, 0, 1, 0], [], []>} : vector<24x48xf32>, vector<128x48xf32>, vector<24x128xf32> -> vector<24x128xf32>
    %c0_3 = arith.constant 0 : index
    %c0_4 = arith.constant 0 : index
    %3 = vector.load %arg3[%c0_3, %c0_4] : memref<24x1xf32, #tpu.memory_space<vmem>>, vector<24x1xf32>
    %4 = vector.broadcast %3 : vector<24x1xf32> to vector<24x128xf32>
    %5 = arith.addf %2, %4 : vector<24x128xf32>
    %cst_5 = arith.constant 0.00999999977 : f32
    %6 = vector.broadcast %cst_5 : f32 to vector<24x128xf32>
    %7 = arith.mulf %6, %5 : vector<24x128xf32>
    %8 = arith.maximumf %5, %7 : vector<24x128xf32>
    %c0_6 = arith.constant 0 : index
    %c0_7 = arith.constant 0 : index
    %9 = vector.load %arg4[%c0_6, %c0_7] : memref<12x24xf32, #tpu.memory_space<vmem>>, vector<12x24xf32>
    %cst_8 = arith.constant dense<0.000000e+00> : vector<12x128xf32>
    %10 = tpu.matmul %9, %8, %cst_8 {dimension_numbers = #tpu.dot_dimension_numbers<[1], [0], [0], [1], [0, 0, 1, 1], [], []>} : vector<12x24xf32>, vector<24x128xf32>, vector<12x128xf32> -> vector<12x128xf32>
    %c0_9 = arith.constant 0 : index
    %c0_10 = arith.constant 0 : index
    %11 = vector.load %arg5[%c0_9, %c0_10] : memref<12x1xf32, #tpu.memory_space<vmem>>, vector<12x1xf32>
    %12 = vector.broadcast %11 : vector<12x1xf32> to vector<12x128xf32>
    %13 = arith.addf %10, %12 : vector<12x128xf32>
    %cst_11 = arith.constant 0.00999999977 : f32
    %14 = vector.broadcast %cst_11 : f32 to vector<12x128xf32>
    %15 = arith.mulf %14, %13 : vector<12x128xf32>
    %16 = arith.maximumf %13, %15 : vector<12x128xf32>
    %c0_12 = arith.constant 0 : index
    %c0_13 = arith.constant 0 : index
    %17 = vector.load %arg6[%c0_12, %c0_13] : memref<8x12xf32, #tpu.memory_space<vmem>>, vector<8x12xf32>
    %cst_14 = arith.constant dense<0.000000e+00> : vector<8x128xf32>
    %18 = tpu.matmul %17, %16, %cst_14 {dimension_numbers = #tpu.dot_dimension_numbers<[1], [0], [0], [1], [0, 0, 1, 1], [], []>} : vector<8x12xf32>, vector<12x128xf32>, vector<8x128xf32> -> vector<8x128xf32>
    %c0_15 = arith.constant 0 : index
    %c0_16 = arith.constant 0 : index
    %19 = vector.load %arg7[%c0_15, %c0_16] : memref<8x1xf32, #tpu.memory_space<vmem>>, vector<8x1xf32>
    %20 = vector.broadcast %19 : vector<8x1xf32> to vector<8x128xf32>
    %21 = arith.addf %18, %20 : vector<8x128xf32>
    %cst_17 = arith.constant 0.00999999977 : f32
    %22 = vector.broadcast %cst_17 : f32 to vector<8x128xf32>
    %23 = arith.mulf %22, %21 : vector<8x128xf32>
    %24 = arith.maximumf %21, %23 : vector<8x128xf32>
    %c0_18 = arith.constant 0 : index
    %c0_19 = arith.constant 0 : index
    %25 = vector.load %arg8[%c0_18, %c0_19] : memref<8x1xf32, #tpu.memory_space<vmem>>, vector<8x1xf32>
    %26 = vector.broadcast %25 : vector<8x1xf32> to vector<8x128xf32>
    %27 = arith.mulf %24, %26 : vector<8x128xf32>
    %cst_20 = arith.constant dense<0.000000e+00> : vector<128xf32>
    %28 = vector.multi_reduction <add>, %27, %cst_20 [0] : vector<8x128xf32> to vector<128xf32>
    %29 = vector.shape_cast %28 : vector<128xf32> to vector<1x128xf32>
    %cst_21 = arith.constant 0.000000e+00 : f32
    %30 = vector.broadcast %cst_21 : f32 to vector<1x128xf32>
    %31 = arith.subf %30, %29 : vector<1x128xf32>
    %32 = math.exp %31 : vector<1x128xf32>
    %cst_22 = arith.constant 1.000000e+00 : f32
    %33 = vector.broadcast %cst_22 : f32 to vector<1x128xf32>
    %34 = arith.addf %33, %32 : vector<1x128xf32>
    %35 = tpu.reciprocal %34 {approx = true} : vector<1x128xf32> -> vector<1x128xf32>
    %c0_23 = arith.constant 0 : index
    %c0_24 = arith.constant 0 : index
    %36 = vector.load %arg9[%c0_23, %c0_24] : memref<1x128xf32, #tpu.memory_space<vmem>>, vector<1x128xf32>
    tpu.vector_store %arg9[%c0_23, %c0_24], %35 {strides = array<i32>} : memref<1x128xf32, #tpu.memory_space<vmem>>, vector<1x128xf32>,
    return
  }
  func.func @transform_0(%arg0: i32) -> (i32, i32) {
    %c0_i32 = arith.constant 0 : i32
    %c0_i32_0 = arith.constant 0 : i32
    return %arg0, %c0_i32 : i32, i32
  }
  func.func @transform_1(%arg0: i32) -> (i32, i32) {
    %c0_i32 = arith.constant 0 : i32
    %c0_i32_0 = arith.constant 0 : i32
    %c0_i32_1 = arith.constant 0 : i32
    return %c0_i32, %c0_i32_0 : i32, i32
  }
  func.func @transform_2(%arg0: i32) -> (i32, i32) {
    %c0_i32 = arith.constant 0 : i32
    %c0_i32_0 = arith.constant 0 : i32
    %c0_i32_1 = arith.constant 0 : i32
    return %c0_i32, %c0_i32_0 : i32, i32
  }
  func.func @transform_3(%arg0: i32) -> (i32, i32) {
    %c0_i32 = arith.constant 0 : i32
    %c0_i32_0 = arith.constant 0 : i32
    %c0_i32_1 = arith.constant 0 : i32
    return %c0_i32, %c0_i32_0 : i32, i32
  }
  func.func @transform_4(%arg0: i32) -> (i32, i32) {
    %c0_i32 = arith.constant 0 : i32
    %c0_i32_0 = arith.constant 0 : i32
    %c0_i32_1 = arith.constant 0 : i32
    return %c0_i32, %c0_i32_0 : i32, i32
  }
  func.func @transform_5(%arg0: i32) -> (i32, i32) {
    %c0_i32 = arith.constant 0 : i32
    %c0_i32_0 = arith.constant 0 : i32
    %c0_i32_1 = arith.constant 0 : i32
    return %c0_i32, %c0_i32_0 : i32, i32
  }
  func.func @transform_6(%arg0: i32) -> (i32, i32) {
    %c0_i32 = arith.constant 0 : i32
    %c0_i32_0 = arith.constant 0 : i32
    %c0_i32_1 = arith.constant 0 : i32
    return %c0_i32, %c0_i32_0 : i32, i32
  }
  func.func @transform_7(%arg0: i32) -> (i32, i32) {
    %c0_i32 = arith.constant 0 : i32
    %c0_i32_0 = arith.constant 0 : i32
    %c0_i32_1 = arith.constant 0 : i32
    return %c0_i32, %c0_i32_0 : i32, i32
  }
  func.func @transform_8(%arg0: i32) -> (i32, i32) {
    %c0_i32 = arith.constant 0 : i32
    %c0_i32_0 = arith.constant 0 : i32
    return %c0_i32, %arg0 : i32, i32
  }
}

</mosaic_0001>

<llo_original>
// kernel: mlp_forward.1
$region0: #{mlp_forward.1}
  #allocation0 [shape = 'u32[]', space=smem, size = 0x4, offset = 0x4, fixed_abs, tag = 'smem constant byte address 0x4 - core index']
  #allocation1 [shape = 'u32[144,128]{1,0:T(1,128)}', space=vmem, size = 0x12000, scoped, tag = 'internal scratch']
  %s0 = inlined_call_operand.vmem [shape: f32[16,48], index: 0, kind: input, shape index: {}]
  %s1 = inlined_call_operand.vmem [shape: f32[24,48], index: 1, kind: input, shape index: {}]
  %s2 = inlined_call_operand.vmem [shape: f32[24,1], index: 2, kind: input, shape index: {}]
  %s3 = inlined_call_operand.vmem [shape: f32[12,24], index: 3, kind: input, shape index: {}]
  %s4 = inlined_call_operand.vmem [shape: f32[12,1], index: 4, kind: input, shape index: {}]
  %s5 = inlined_call_operand.vmem [shape: f32[8,12], index: 5, kind: input, shape index: {}]
  %s6 = inlined_call_operand.vmem [shape: f32[8,1], index: 6, kind: input, shape index: {}]
  %s7 = inlined_call_operand.vmem [shape: f32[8,1], index: 7, kind: input, shape index: {}]
  %s8 = inlined_call_operand.vmem [shape: f32[1,128], index: 8, kind: output, shape index: {}]
  %s9 = sld [smem:[#allocation0]]
  $region42: #{mlp_forward.1} parent=0
    _
  %s11 = ssub.s32 1, %s9
  %s12 = scalar_select 0, %s11, %s9
  // Predicated region
  $region2: #{mlp_forward.1} parent=0 // pred_check
    _
  $region3: #{mlp_forward.1} parent=0 // pred_check_branch
    %14 = sbr.rel (0) target = $region5
  $region4: #{mlp_forward.1} parent=0 // pred_region
    _
  $region5: #{mlp_forward.1} parent=0 // pred_fallthru
    _
  // Predicated region
  $region6: #{mlp_forward.1} parent=0 // pred_check
    _
  $region7: #{mlp_forward.1} parent=0 // pred_check_branch
    %16 = sbr.rel (0) target = $region9
  $region8: #{mlp_forward.1} parent=0 // pred_region
    _
  $region9: #{mlp_forward.1} parent=0 // pred_fallthru
    _
  // Predicated region
  $region10: #{mlp_forward.1} parent=0 // pred_check
    _
  $region11: #{mlp_forward.1} parent=0 // pred_check_branch
    %18 = sbr.rel (0) target = $region13
  $region12: #{mlp_forward.1} parent=0 // pred_region
    _
  $region13: #{mlp_forward.1} parent=0 // pred_fallthru
    _
  // Predicated region
  $region14: #{mlp_forward.1} parent=0 // pred_check
    _
  $region15: #{mlp_forward.1} parent=0 // pred_check_branch
    %20 = sbr.rel (0) target = $region17
  $region16: #{mlp_forward.1} parent=0 // pred_region
    _
  $region17: #{mlp_forward.1} parent=0 // pred_fallthru
    _
  // Predicated region
  $region18: #{mlp_forward.1} parent=0 // pred_check
    _
  $region19: #{mlp_forward.1} parent=0 // pred_check_branch
    %22 = sbr.rel (0) target = $region21
  $region20: #{mlp_forward.1} parent=0 // pred_region
    _
  $region21: #{mlp_forward.1} parent=0 // pred_fallthru
    _
  // Predicated region
  $region22: #{mlp_forward.1} parent=0 // pred_check
    _
  $region23: #{mlp_forward.1} parent=0 // pred_check_branch
    %24 = sbr.rel (0) target = $region25
  $region24: #{mlp_forward.1} parent=0 // pred_region
    _
  $region25: #{mlp_forward.1} parent=0 // pred_fallthru
    _
  // Predicated region
  $region26: #{mlp_forward.1} parent=0 // pred_check
    _
  $region27: #{mlp_forward.1} parent=0 // pred_check_branch
    %26 = sbr.rel (0) target = $region29
  $region28: #{mlp_forward.1} parent=0 // pred_region
    _
  $region29: #{mlp_forward.1} parent=0 // pred_fallthru
    _
  // Predicated region
  $region30: #{mlp_forward.1} parent=0 // pred_check
    _
  $region31: #{mlp_forward.1} parent=0 // pred_check_branch
    %28 = sbr.rel (0) target = $region33
  $region32: #{mlp_forward.1} parent=0 // pred_region
    _
  $region33: #{mlp_forward.1} parent=0 // pred_fallthru
    _
  %v29 = vld [vmem:[%s0] sm:$0xff]
  %v30 = vld [vmem:[%s0 + $0x8] sm:$0xff]
  %v31 = vld [vmem:[%s0 + $0x10] sm:$0xff]
  %v32 = vld [vmem:[%s0 + $0x18] sm:$0xff]
  %v33 = vld [vmem:[%s0 + $0x20] sm:$0xff]
  %v34 = vld [vmem:[%s0 + $0x28] sm:$0xff]
  %v35 = vld [vmem:[%s0 + $0x30] sm:$0xff]
  %v36 = vld [vmem:[%s0 + $0x38] sm:$0xff]
  %v37 = vld [vmem:[%s0 + $0x40] sm:$0xff]
  %v38 = vld [vmem:[%s0 + $0x48] sm:$0xff]
  %v39 = vld [vmem:[%s0 + $0x50] sm:$0xff]
  %v40 = vld [vmem:[%s0 + $0x58] sm:$0xff]
  %v41 = vld [vmem:[%s0 + $0x60] sm:$0xff]
  %v42 = vld [vmem:[%s0 + $0x68] sm:$0xff]
  %v43 = vld [vmem:[%s0 + $0x70] sm:$0xff]
  %v44 = vld [vmem:[%s0 + $0x78] sm:$0xff]
  %v45 = vld [vmem:[%s1] sm:$0xff]
  %v46 = vld [vmem:[%s1 + $0x8] sm:$0xff]
  %v47 = vld [vmem:[%s1 + $0x10] sm:$0xff]
  %v48 = vld [vmem:[%s2] sm:$0xff]
  %v49 = vld [vmem:[%s2 + $0x8] sm:$0xff]
  %v50 = vld [vmem:[%s2 + $0x10] sm:$0xff]
  %52 = vset.pattern.permute.xlu0 0
  %53 = vperm.xlu0 %52, %v48
  %v54 = vpop.permute.xlu0 %53
  %57 = vset.pattern.permute.xlu0 0
  %58 = vperm.xlu0 %57, %v49
  %v59 = vpop.permute.xlu0 %58
  %62 = vset.pattern.permute.xlu0 0
  %63 = vperm.xlu0 %62, %v50
  %v64 = vpop.permute.xlu0 %63
  %vm66 = vcmask 392192
  %v68 = vsel %vm66, %v45, 0
  %v71 = vsel %vm66, %v46, 0
  %v74 = vsel %vm66, %v47, 0
  %v77 = vsel %vm66, %v29, 0
  %v80 = vsel %vm66, %v30, 0
  %v83 = vsel %vm66, %v31, 0
  %v86 = vsel %vm66, %v32, 0
  %v89 = vsel %vm66, %v33, 0
  %v92 = vsel %vm66, %v34, 0
  %v95 = vsel %vm66, %v35, 0
  %v98 = vsel %vm66, %v36, 0
  %v101 = vsel %vm66, %v37, 0
  %v104 = vsel %vm66, %v38, 0
  %v107 = vsel %vm66, %v39, 0
  %v110 = vsel %vm66, %v40, 0
  %v113 = vsel %vm66, %v41, 0
  %v116 = vsel %vm66, %v42, 0
  %v119 = vsel %vm66, %v43, 0
  %v122 = vsel %vm66, %v44, 0
  %124 = vmatprep.subr.mxu0 0.0
  %125 = vmatpush1.xpose.msra.mxu0 %v77
  %126 = vmatprep.subr.mxu0 0.0
  %127 = vmatpush1.xpose.msra.mxu0 %v80
  %128 = vmatprep.subr.mxu0 0.0
  %129 = vmatpush1.xpose.msra.mxu0 %v83
  %130 = vmatprep.subr.mxu0 0.0
  %131 = vmatpush1.xpose.msra.mxu0 %v86
  %132 = vmatprep.subr.mxu0 0.0
  %133 = vmatpush1.xpose.msra.mxu0 %v89
  %134 = vmatprep.subr.mxu0 0.0
  %135 = vmatpush1.xpose.msra.mxu0 %v92
  %136 = vmatprep.subr.mxu0 0.0
  %137 = vmatpush1.xpose.msra.mxu0 %v95
  %138 = vmatprep.subr.mxu0 0.0
  %139 = vmatpush1.xpose.msra.mxu0 %v98
  %140 = vmatprep.subr.mxu0 0.0
  %141 = vmatpush1.xpose.msra.mxu0 %v101
  %142 = vmatprep.subr.mxu0 0.0
  %143 = vmatpush1.xpose.msra.mxu0 %v104
  %144 = vmatprep.subr.mxu0 0.0
  %145 = vmatpush1.xpose.msra.mxu0 %v107
  %146 = vmatprep.subr.mxu0 0.0
  %147 = vmatpush1.xpose.msra.mxu0 %v110
  %148 = vmatprep.subr.mxu0 0.0
  %149 = vmatpush1.xpose.msra.mxu0 %v113
  %150 = vmatprep.subr.mxu0 0.0
  %151 = vmatpush1.xpose.msra.mxu0 %v116
  %152 = vmatprep.subr.mxu0 0.0
  %153 = vmatpush1.xpose.msra.mxu0 %v119
  %154 = vmatprep.subr.mxu0 0.0
  %155 = vmatpush1.xpose.msra.mxu0 %v122
  %156 = vmatprep.subr.mxu0 0.0
  %157 = vmatpush1.xpose.msra.mxu0 0.0
  %158 = vmatprep.subr.mxu0 0.0
  %159 = vmatpush1.xpose.msra.mxu0 0.0
  %160 = vmatprep.subr.mxu0 0.0
  %161 = vmatpush1.xpose.msra.mxu0 0.0
  %162 = vmatprep.subr.mxu0 0.0
  %163 = vmatpush1.xpose.msra.mxu0 0.0
  %164 = vmatprep.subr.mxu0 0.0
  %165 = vmatpush1.xpose.msra.mxu0 0.0
  %166 = vmatprep.subr.mxu0 0.0
  %167 = vmatpush1.xpose.msra.mxu0 0.0
  %168 = vmatprep.subr.mxu0 0.0
  %169 = vmatpush1.xpose.msra.mxu0 0.0
  %170 = vmatprep.subr.mxu0 0.0
  %171 = vmatpush1.xpose.msra.mxu0 0.0
  %172 = vmatprep.subr.mxu0 0.0
  %173 = vmatpush1.xpose.msra.mxu0 0.0
  %174 = vmatprep.subr.mxu0 0.0
  %175 = vmatpush1.xpose.msra.mxu0 0.0
  %176 = vmatprep.subr.mxu0 0.0
  %177 = vmatpush1.xpose.msra.mxu0 0.0
  %178 = vmatprep.subr.mxu0 0.0
  %179 = vmatpush1.xpose.msra.mxu0 0.0
  %180 = vmatprep.subr.mxu0 0.0
  %181 = vmatpush1.xpose.msra.mxu0 0.0
  %182 = vmatprep.subr.mxu0 0.0
  %183 = vmatpush1.xpose.msra.mxu0 0.0
  %184 = vmatprep.subr.mxu0 0.0
  %185 = vmatpush1.xpose.msra.mxu0 0.0
  %186 = vmatprep.subr.mxu0 0.0
  %187 = vmatpush1.xpose.msra.mxu0 0.0
  %188 = vmatprep.mubr.f32.mxu0 0.0
  %189 = vmatmul.mubr.f32.gmra.mrb[0].mxu0 %v68
  %v190 = vpop.f32.mrb[0].mxu0
  %v191 = vadd.f32 %v54, %v190
  %v192 = vpop.f32.mrb[0].mxu0
  %193 = vmatprep.mubr.f32.mxu0 0.0
  %194 = vmatmul.mubr.f32.gmra.mrb[0].mxu0 %v71
  %v195 = vpop.f32.mrb[0].mxu0
  %v196 = vadd.f32 %v59, %v195
  %v197 = vpop.f32.mrb[0].mxu0
  %198 = vmatprep.mubr.f32.mxu0 0.0
  %199 = vmatmul.mubr.f32.gmra.mrb[0].mxu0 %v74
  %v200 = vpop.f32.mrb[0].mxu0
  %v201 = vadd.f32 %v64, %v200
  %v202 = vpop.f32.mrb[0].mxu0
  %203 = vdwg.mxu0
  %v204 = vmul.f32 %v191, 0.01
  %v205 = vmul.f32 %v196, 0.01
  %v206 = vmul.f32 %v201, 0.01
  %v207 = vmax.f32 %v191, %v204
  %v208 = vmax.f32 %v196, %v205
  %v209 = vmax.f32 %v201, %v206
  %v210 = vld [vmem:[%s3] sm:$0xff]
  %v211 = vld [vmem:[%s3 + $0x8] sm:$0xf]
  %v212 = vld [vmem:[%s4] sm:$0xff]
  %v213 = vld [vmem:[%s4 + $0x8] sm:$0xf]
  %215 = vset.pattern.permute.xlu0 0
  %216 = vperm.xlu0 %215, %v212
  %v217 = vpop.permute.xlu0 %216
  %220 = vset.pattern.permute.xlu0 0
  %221 = vperm.xlu0 %220, %v213
  %v222 = vpop.permute.xlu0 %221
  %vm224 = vcmask 195584
  %v226 = vsel %vm224, %v210, 0
  %v229 = vsel %vm224, %v211, 0
  %231 = vmatprep.subr.mxu0 0.0
  %232 = vmatpush1.msra.mxu0 %v207
  %233 = vmatprep.subr.mxu0 0.0
  %234 = vmatpush1.msra.mxu0 %v208
  %235 = vmatprep.subr.mxu0 0.0
  %236 = vmatpush1.msra.mxu0 %v209
  %237 = vmatprep.subr.mxu0 0.0
  %238 = vmatpush1.msra.mxu0 0.0
  %239 = vmatprep.subr.mxu0 0.0
  %240 = vmatpush1.msra.mxu0 0.0
  %241 = vmatprep.subr.mxu0 0.0
  %242 = vmatpush1.msra.mxu0 0.0
  %243 = vmatprep.subr.mxu0 0.0
  %244 = vmatpush1.msra.mxu0 0.0
  %245 = vmatprep.subr.mxu0 0.0
  %246 = vmatpush1.msra.mxu0 0.0
  %247 = vmatprep.subr.mxu0 0.0
  %248 = vmatpush1.msra.mxu0 0.0
  %249 = vmatprep.subr.mxu0 0.0
  %250 = vmatpush1.msra.mxu0 0.0
  %251 = vmatprep.subr.mxu0 0.0
  %252 = vmatpush1.msra.mxu0 0.0
  %253 = vmatprep.subr.mxu0 0.0
  %254 = vmatpush1.msra.mxu0 0.0
  %255 = vmatprep.subr.mxu0 0.0
  %256 = vmatpush1.msra.mxu0 0.0
  %257 = vmatprep.subr.mxu0 0.0
  %258 = vmatpush1.msra.mxu0 0.0
  %259 = vmatprep.subr.mxu0 0.0
  %260 = vmatpush1.msra.mxu0 0.0
  %261 = vmatprep.subr.mxu0 0.0
  %262 = vmatpush1.msra.mxu0 0.0
  %263 = vmatprep.subr.mxu0 0.0
  %264 = vmatpush1.msra.mxu0 0.0
  %265 = vmatprep.subr.mxu0 0.0
  %266 = vmatpush1.msra.mxu0 0.0
  %267 = vmatprep.subr.mxu0 0.0
  %268 = vmatpush1.msra.mxu0 0.0
  %269 = vmatprep.subr.mxu0 0.0
  %270 = vmatpush1.msra.mxu0 0.0
  %271 = vmatprep.subr.mxu0 0.0
  %272 = vmatpush1.msra.mxu0 0.0
  %273 = vmatprep.subr.mxu0 0.0
  %274 = vmatpush1.msra.mxu0 0.0
  %275 = vmatprep.subr.mxu0 0.0
  %276 = vmatpush1.msra.mxu0 0.0
  %277 = vmatprep.subr.mxu0 0.0
  %278 = vmatpush1.msra.mxu0 0.0
  %279 = vmatprep.subr.mxu0 0.0
  %280 = vmatpush1.msra.mxu0 0.0
  %281 = vmatprep.subr.mxu0 0.0
  %282 = vmatpush1.msra.mxu0 0.0
  %283 = vmatprep.subr.mxu0 0.0
  %284 = vmatpush1.msra.mxu0 0.0
  %285 = vmatprep.subr.mxu0 0.0
  %286 = vmatpush1.msra.mxu0 0.0
  %287 = vmatprep.subr.mxu0 0.0
  %288 = vmatpush1.msra.mxu0 0.0
  %289 = vmatprep.subr.mxu0 0.0
  %290 = vmatpush1.msra.mxu0 0.0
  %291 = vmatprep.subr.mxu0 0.0
  %292 = vmatpush1.msra.mxu0 0.0
  %293 = vmatprep.subr.mxu0 0.0
  %294 = vmatpush1.msra.mxu0 0.0
  %295 = vmatprep.mubr.f32.mxu0 0.0
  %296 = vmatmul.mubr.f32.gmra.mrb[0].mxu0 %v226
  %v297 = vpop.f32.mrb[0].mxu0
  %v298 = vadd.f32 %v217, %v297
  %v299 = vpop.f32.mrb[0].mxu0
  %300 = vmatprep.mubr.f32.mxu0 0.0
  %301 = vmatmul.mubr.f32.gmra.mrb[0].mxu0 %v229
  %v302 = vpop.f32.mrb[0].mxu0
  %v303 = vadd.f32 %v222, %v302
  %v304 = vpop.f32.mrb[0].mxu0
  %305 = vdwg.mxu0
  %v306 = vmul.f32 %v298, 0.01
  %v307 = vmul.f32 %v303, 0.01
  %v308 = vmax.f32 %v298, %v306
  %v309 = vmax.f32 %v303, %v307
  %v310 = vld [vmem:[%s5] sm:$0xff]
  %v311 = vld [vmem:[%s6] sm:$0xff]
  %313 = vset.pattern.permute.xlu0 0
  %314 = vperm.xlu0 %313, %v311
  %v315 = vpop.permute.xlu0 %314
  %vm317 = vcmask 97280
  %v319 = vsel %vm317, %v310, 0
  %vm321 = vcmask 1043456
  %v323 = vsel %vm321, %v309, 0
  %325 = vmatprep.subr.mxu0 0.0
  %326 = vmatpush1.msra.mxu0 %v308
  %327 = vmatprep.subr.mxu0 0.0
  %328 = vmatpush1.msra.mxu0 %v323
  %329 = vmatprep.subr.mxu0 0.0
  %330 = vmatpush1.msra.mxu0 0.0
  %331 = vmatprep.subr.mxu0 0.0
  %332 = vmatpush1.msra.mxu0 0.0
  %333 = vmatprep.subr.mxu0 0.0
  %334 = vmatpush1.msra.mxu0 0.0
  %335 = vmatprep.subr.mxu0 0.0
  %336 = vmatpush1.msra.mxu0 0.0
  %337 = vmatprep.subr.mxu0 0.0
  %338 = vmatpush1.msra.mxu0 0.0
  %339 = vmatprep.subr.mxu0 0.0
  %340 = vmatpush1.msra.mxu0 0.0
  %341 = vmatprep.subr.mxu0 0.0
  %342 = vmatpush1.msra.mxu0 0.0
  %343 = vmatprep.subr.mxu0 0.0
  %344 = vmatpush1.msra.mxu0 0.0
  %345 = vmatprep.subr.mxu0 0.0
  %346 = vmatpush1.msra.mxu0 0.0
  %347 = vmatprep.subr.mxu0 0.0
  %348 = vmatpush1.msra.mxu0 0.0
  %349 = vmatprep.subr.mxu0 0.0
  %350 = vmatpush1.msra.mxu0 0.0
  %351 = vmatprep.subr.mxu0 0.0
  %352 = vmatpush1.msra.mxu0 0.0
  %353 = vmatprep.subr.mxu0 0.0
  %354 = vmatpush1.msra.mxu0 0.0
  %355 = vmatprep.subr.mxu0 0.0
  %356 = vmatpush1.msra.mxu0 0.0
  %357 = vmatprep.subr.mxu0 0.0
  %358 = vmatpush1.msra.mxu0 0.0
  %359 = vmatprep.subr.mxu0 0.0
  %360 = vmatpush1.msra.mxu0 0.0
  %361 = vmatprep.subr.mxu0 0.0
  %362 = vmatpush1.msra.mxu0 0.0
  %363 = vmatprep.subr.mxu0 0.0
  %364 = vmatpush1.msra.mxu0 0.0
  %365 = vmatprep.subr.mxu0 0.0
  %366 = vmatpush1.msra.mxu0 0.0
  %367 = vmatprep.subr.mxu0 0.0
  %368 = vmatpush1.msra.mxu0 0.0
  %369 = vmatprep.subr.mxu0 0.0
  %370 = vmatpush1.msra.mxu0 0.0
  %371 = vmatprep.subr.mxu0 0.0
  %372 = vmatpush1.msra.mxu0 0.0
  %373 = vmatprep.subr.mxu0 0.0
  %374 = vmatpush1.msra.mxu0 0.0
  %375 = vmatprep.subr.mxu0 0.0
  %376 = vmatpush1.msra.mxu0 0.0
  %377 = vmatprep.subr.mxu0 0.0
  %378 = vmatpush1.msra.mxu0 0.0
  %379 = vmatprep.subr.mxu0 0.0
  %380 = vmatpush1.msra.mxu0 0.0
  %381 = vmatprep.subr.mxu0 0.0
  %382 = vmatpush1.msra.mxu0 0.0
  %383 = vmatprep.subr.mxu0 0.0
  %384 = vmatpush1.msra.mxu0 0.0
  %385 = vmatprep.subr.mxu0 0.0
  %386 = vmatpush1.msra.mxu0 0.0
  %387 = vmatprep.subr.mxu0 0.0
  %388 = vmatpush1.msra.mxu0 0.0
  %389 = vmatprep.mubr.f32.mxu0 0.0
  %390 = vmatmul.mubr.f32.gmra.mrb[0].mxu0 %v319
  %v391 = vpop.f32.mrb[0].mxu0
  %v392 = vadd.f32 %v315, %v391
  %v393 = vpop.f32.mrb[0].mxu0
  %394 = vdwg.mxu0
  %v395 = vmul.f32 %v392, 0.01
  %v396 = vmax.f32 %v392, %v395
  %v397 = vld [vmem:[%s7] sm:$0xff]
  %399 = vset.pattern.permute.xlu0 0
  %400 = vperm.xlu0 %399, %v397
  %v401 = vpop.permute.xlu0 %400
  %v403 = vmul.f32 %v396, %v401
  %v404 = vrot.slane %v403, 4
  %v405 = vadd.f32 %v403, %v404
  %v406 = vrot.slane %v405, 2
  %v407 = vadd.f32 %v405, %v406
  %v408 = vrot.slane %v407, 1
  %v409 = vadd.f32 %v407, %v408
  %v410 = vsub.f32 0.0, %v409
  %v411 = vmul.f32 %v410, 1.442695
  %v412 = vpow.pop %v411
  %v413 = vadd.f32 %v412, 1.0
  %v414 = vrcp.pop %v413
  %415 = vst [vmem:[%s8] sm:$0x1] %v414
  // Predicated region
  $region34: #{mlp_forward.1} parent=0 // pred_check
    _
  $region35: #{mlp_forward.1} parent=0 // pred_check_branch
    %417 = sbr.rel (0) target = $region37
  $region36: #{mlp_forward.1} parent=0 // pred_region
    _
  $region37: #{mlp_forward.1} parent=0 // pred_fallthru
    _
  // Predicated region
  $region38: #{mlp_forward.1} parent=0 // pred_check
    _
  $region39: #{mlp_forward.1} parent=0 // pred_check_branch
    %419 = sbr.rel (0) target = $region41
  $region40: #{mlp_forward.1} parent=0 // pred_region
    _
  $region41: #{mlp_forward.1} parent=0 // pred_fallthru
    _

</llo_original>
